<compile_context>
chip_gen: v7x
topology: tpu7x:2x2x1
jax: 0.10.0
libtpu: 0.0.40
codegen_flags: <defaults>
</compile_context>

<pallas_src>
import functools

import jax
import jax.numpy as jnp
from jax.experimental import pallas as pl
from jax.experimental.pallas import tpu as pltpu


def _pick_tile_rows(height, width, vmem_budget_bytes):
    """Pick tile_rows so tile-sized intermediates stay inside the VMEM budget."""
    s_small, s_big = (height, width) if width >= height else (width, height)
    # Per pixel-column bytes of tile-sized live data:
    #   int32 iotas (s_small + s_big), bf16 one-hot (s_big), f32 gathered hi/lo/sum
    #   (3*s_small), f32 select temp (s_small), accumulators / input tiles (~64).
    per_col = 4 * (s_small + s_big) + 2 * s_big + 16 * s_small + 64
    # Resident: bf16 hi/lo source planes, double-buffered by the pipeline.
    resident = 8 * s_small * s_big + (1 << 20)
    avail = max(vmem_budget_bytes - resident, 256 * 1024)
    target_cols = max(128, min(8192, avail // per_col))
    best = None
    for th in range(1, height + 1):
        if height % th:
            continue
        tp = th * width
        if tp % 128 and tp != height * width:
            continue
        if tp <= target_cols:
            best = th                      # keep largest legal tile under budget
    if best is None:                       # fall back to smallest legal tile
        for th in range(1, height + 1):
            if height % th == 0 and ((th * width) % 128 == 0 or th == height):
                best = th
                break
    return best


def _mvdepth_kernel(params_ref,                 # SMEM prefetch: (B*K*12,) fused params
                    pred_ref, cur_ref,          # (1, 1, TILE_P) depth tiles
                    src_hi_ref, src_lo_ref,     # (1, 1, S_small, S_big) bf16 src planes
                    sum_ref, cnt_ref,           # (1, 1, 1, 128) per-(b,k) partials
                    acc_s, acc_c,               # (1, TILE_P) f32 accumulators
                    small_iota, big_iota,       # persistent int32 iota scratch
                    *, height, width, tile_rows, num_src, contract_over_width):
    b = pl.program_id(0)
    k = pl.program_id(1)
    p = pl.program_id(2)
    last = pl.num_programs(2) - 1
    tile_p = tile_rows * width
    f32 = jnp.float32

    # Fused projection: src_cam_xyz = depth * (C @ [x+.5, y+.5, 1]) + t, where
    # C = (src_K @ src_cam_T_world @ cur_world_T_cam)[:3,:3] @ cur_invK[:3,:3].
    base = (b * num_src + k) * 12
    c00 = params_ref[base + 0]; c01 = params_ref[base + 1]; c02 = params_ref[base + 2]
    c10 = params_ref[base + 3]; c11 = params_ref[base + 4]; c12 = params_ref[base + 5]
    c20 = params_ref[base + 6]; c21 = params_ref[base + 7]; c22 = params_ref[base + 8]
    t0 = params_ref[base + 9]; t1 = params_ref[base + 10]; t2 = params_ref[base + 11]

    # p == 0 fires at the start of every (b, k) sequence, so this is safe even if
    # the (b, k) "parallel" axes get sharded across TensorCores.
    @pl.when(p == 0)
    def _():
        acc_s[...] = jnp.zeros_like(acc_s)
        acc_c[...] = jnp.zeros_like(acc_c)
        small_iota[...] = jax.lax.broadcasted_iota(jnp.int32, small_iota.shape, 0)
        big_iota[...] = jax.lax.broadcasted_iota(jnp.int32, big_iota.shape, 0)

    # In-tile pixel-center coordinates from a lane iota; row index via a single
    # guarded float multiply + floor (exact for all practical W, no int divide).
    j = jax.lax.broadcasted_iota(jnp.int32, (1, tile_p), 1)
    yy = jnp.floor((j.astype(f32) + 0.5) * (1.0 / width)).astype(jnp.int32)
    xx = j - yy * width
    x = xx.astype(f32) + 0.5
    y = (yy + p * tile_rows).astype(f32) + 0.5

    cur_d = cur_ref[0]           # (1, tile_p)
    pred_d = pred_ref[0]         # (1, tile_p)
    src_hi = src_hi_ref[0, 0]    # (S_small, S_big) bf16
    src_lo = src_lo_ref[0, 0]    # (S_small, S_big) bf16

    r0 = c00 * x + c01 * y + c02
    r1 = c10 * x + c11 * y + c12
    r2 = c20 * x + c21 * y + c22

    eps = 1e-8

    # ---- project cur_depth into the src camera (valid-mask path) ----
    z_cur = cur_d * r2 + t2
    inv_z = 1.0 / (z_cur + eps)          # exact, matches torch divide
    u = (cur_d * r0 + t0) * inv_z
    v = (cur_d * r1 + t1) * inv_z

    # F.grid_sample(nearest, zeros, align_corners=False): index = round(coord - 0.5).
    # The float clip only bounds the int conversion; OOB stays OOB.
    # TODO(synk): jnp.round is half-to-even; torch nearest may round .5 differently.
    ix = jnp.round(jnp.clip(u - 0.5, -4.0, width + 4.0)).astype(jnp.int32)
    iy = jnp.round(jnp.clip(v - 0.5, -4.0, height + 4.0)).astype(jnp.int32)

    if contract_over_width:              # src stored (H, W): contract over W
        idx_big, idx_small = ix, iy
    else:                                # src stored (W, H): contract over H
        idx_big, idx_small = iy, ix

    # Stage 1 (MXU, bf16 hi/lo): gathered[r, q] = src[r, idx_big[q]] (0 if OOB).
    onehot_big = (big_iota[...] == idx_big).astype(jnp.bfloat16)        # (S_big, tile_p)
    g_hi = jnp.dot(src_hi, onehot_big, preferred_element_type=f32)
    g_lo = jnp.dot(src_lo, onehot_big, preferred_element_type=f32)
    gathered = g_hi + g_lo                                              # (S_small, tile_p)

    # Stage 2 (VPU select + XLU cross-sublane reduce): sampled[q] = gathered[idx_small[q], q].
    sel = jnp.where(small_iota[...] == idx_small, gathered, 0.0)
    sampled = jnp.sum(sel, axis=0, keepdims=True)                       # (1, tile_p)

    valid = (z_cur < 1.05 * sampled) & (z_cur > 0.0) & (sampled > 0.0)

    # ---- project depth_pred into the src camera (only z needed) ----
    z_pred = pred_d * r2 + t2

    # torch: |log(sampled) - log(z_pred)| masked_select(valid).nanmean()
    diff = jnp.abs(jnp.log(sampled) - jnp.log(z_pred))
    include = valid & jnp.logical_not(jnp.isnan(diff))

    acc_s[...] += jnp.where(include, diff, 0.0)
    acc_c[...] += include.astype(f32)

    @pl.when(p == last)
    def _():
        sum_ref[...] = jnp.full(sum_ref.shape, jnp.sum(acc_s[...]), f32)
        cnt_ref[...] = jnp.full(cnt_ref.shape, jnp.sum(acc_c[...]), f32)


def mv_depth_loss(depth_pred_b1hw, cur_depth_b1hw, src_depth_bk1hw,
                  cur_invK_b44, src_K_bk44, cur_world_T_cam_b44,
                  src_cam_T_world_bk44, *, tile_rows=None):
    f32 = jnp.float32
    depth_pred_b1hw = depth_pred_b1hw.astype(f32)
    cur_depth_b1hw = cur_depth_b1hw.astype(f32)
    src_f32 = src_depth_bk1hw.astype(f32)

    B, _, H, W = depth_pred_b1hw.shape
    K = src_f32.shape[1]
    N = H * W

    # Generation-aware VMEM budget (v7x: 64 MiB/TC, v5e/v6e: 128 MiB).
    try:
        vmem_cap = int(pltpu.get_tpu_info().vmem_capacity_bytes)
    except Exception:
        vmem_cap = 64 * 1024 * 1024
    vmem_limit = min(int(vmem_cap * 0.8), 112 * 1024 * 1024)

    if tile_rows is None:
        tile_rows = _pick_tile_rows(H, W, vmem_budget_bytes=vmem_limit // 2)
    assert H % tile_rows == 0, "tile_rows must divide H"
    tile_p = tile_rows * W
    assert tile_p % 128 == 0 or tile_p == N, "tile must be lane aligned or full image"
    P = H // tile_rows

    # Orient the gather so the MXU contracts over the larger image dimension.
    contract_over_width = W >= H
    src_img = src_f32[:, :, 0]                                  # (B, K, H, W)
    if not contract_over_width:
        src_img = jnp.transpose(src_img, (0, 1, 3, 2))          # (B, K, W, H)
    s_small, s_big = int(src_img.shape[2]), int(src_img.shape[3])

    # bf16 hi/lo split: exact per-element reconstruction to ~16 mantissa bits.
    src_hi = src_img.astype(jnp.bfloat16)
    src_lo = (src_img - src_hi.astype(f32)).astype(jnp.bfloat16)

    # --- host glue: fold 4x4 camera matrices into per-(b,k) 3x3 C + translation t ---
    M_bk44 = jnp.einsum('bkij,bkjl,blm->bkim',
                        src_K_bk44.astype(f32),
                        src_cam_T_world_bk44.astype(f32),
                        cur_world_T_cam_b44.astype(f32))
    C_bk33 = jnp.einsum('bkij,bjl->bkil', M_bk44[:, :, :3, :3],
                        cur_invK_b44.astype(f32)[:, :3, :3])
    t_bk3 = M_bk44[:, :, :3, 3]
    params_flat = jnp.concatenate(
        [C_bk33.reshape(B, K, 9), t_bk3], axis=-1).reshape(B * K * 12).astype(f32)

    pred_flat = depth_pred_b1hw.reshape(B, 1, N)
    cur_flat = cur_depth_b1hw.reshape(B, 1, N)

    kernel = functools.partial(_mvdepth_kernel, height=H, width=W,
                               tile_rows=tile_rows, num_src=K,
                               contract_over_width=contract_over_width)

    # TODO(synk): on v7x, verify via profile that both TensorCores engage on the
    # (b, k) parallel axes; if not, add a leading CORE_PARALLEL axis over cores.
    sums, cnts = pl.pallas_call(
        kernel,
        out_shape=(jax.ShapeDtypeStruct((B, K, 1, 128), f32),
                   jax.ShapeDtypeStruct((B, K, 1, 128), f32)),
        grid_spec=pltpu.PrefetchScalarGridSpec(
            num_scalar_prefetch=1,
            grid=(B, K, P),
            in_specs=[
                pl.BlockSpec((1, 1, tile_p), lambda b, k, p, prm: (b, 0, p)),
                pl.BlockSpec((1, 1, tile_p), lambda b, k, p, prm: (b, 0, p)),
                pl.BlockSpec((1, 1, s_small, s_big), lambda b, k, p, prm: (b, k, 0, 0)),
                pl.BlockSpec((1, 1, s_small, s_big), lambda b, k, p, prm: (b, k, 0, 0)),
            ],
            out_specs=[
                pl.BlockSpec((1, 1, 1, 128), lambda b, k, p, prm: (b, k, 0, 0)),
                pl.BlockSpec((1, 1, 1, 128), lambda b, k, p, prm: (b, k, 0, 0)),
            ],
            scratch_shapes=[pltpu.VMEM((1, tile_p), f32),
                            pltpu.VMEM((1, tile_p), f32),
                            pltpu.VMEM((s_small, tile_p), jnp.int32),
                            pltpu.VMEM((s_big, tile_p), jnp.int32)],
        ),
        compiler_params=pltpu.CompilerParams(
            dimension_semantics=("parallel", "parallel", "arbitrary"),
            vmem_limit_bytes=vmem_limit),
    )(params_flat, pred_flat, cur_flat, src_hi, src_lo)

    # Per-src-frame nanmean over ALL batch elements (torch masked_select+nanmean),
    # then mean over source frames (loss / num_src_frames).
    s_k = jnp.sum(sums[:, :, 0, 0], axis=0)
    c_k = jnp.sum(cnts[:, :, 0, 0], axis=0)
    per_pair = s_k / c_k
    return jnp.mean(per_pair)


if __name__ == "__main__":
    B, K, H, W = 2, 2, 16, 16
    key = jax.random.PRNGKey(0)
    k1, k2, k3 = jax.random.split(key, 3)
    depth_pred = jax.random.uniform(k1, (B, 1, H, W), jnp.float32, 1.0, 3.0)
    cur_depth = jax.random.uniform(k2, (B, 1, H, W), jnp.float32, 1.0, 3.0)
    src_depth = jax.random.uniform(k3, (B, K, 1, H, W), jnp.float32, 1.0, 3.0)

    fx = fy = float(W)
    cx, cy = W / 2.0, H / 2.0
    K44 = jnp.array([[fx, 0.0, cx, 0.0],
                     [0.0, fy, cy, 0.0],
                     [0.0, 0.0, 1.0, 0.0],
                     [0.0, 0.0, 0.0, 1.0]], jnp.float32)
    cur_invK = jnp.broadcast_to(jnp.linalg.inv(K44), (B, 4, 4))
    src_K = jnp.broadcast_to(K44, (B, K, 4, 4))
    cur_world_T_cam = jnp.broadcast_to(jnp.eye(4, dtype=jnp.float32), (B, 4, 4))
    src_cam_T_world = jnp.stack(
        [jnp.eye(4, dtype=jnp.float32).at[0, 3].set(0.05 * (i + 1)) for i in range(K)],
        axis=0)
    src_cam_T_world = jnp.broadcast_to(src_cam_T_world, (B, K, 4, 4))

    # tile_rows=8 -> 2 pixel tiles per image: exercises the accumulate/finalize path.
    loss = mv_depth_loss(depth_pred, cur_depth, src_depth,
                         cur_invK, src_K, cur_world_T_cam, src_cam_T_world,
                         tile_rows=8)
    jax.block_until_ready(loss)
    print("KERNEL_OK")
</pallas_src>

<mosaic_0001>
module attributes {stable_mosaic.version = 11 : i64} {
  func.func @_mvdepth_kernel(%arg0: i32, %arg1: i32, %arg2: i32, %arg3: memref<48xf32, #tpu.memory_space<smem>>, %arg4: memref<1x1x128xf32, #tpu.memory_space<vmem>>, %arg5: memref<1x1x128xf32, #tpu.memory_space<vmem>>, %arg6: memref<1x1x16x16xbf16, #tpu.memory_space<vmem>>, %arg7: memref<1x1x16x16xbf16, #tpu.memory_space<vmem>>, %arg8: memref<1x1x1x128xf32, #tpu.memory_space<vmem>>, %arg9: memref<1x1x1x128xf32, #tpu.memory_space<vmem>>, %arg10: memref<1x128xf32, #tpu.memory_space<vmem>>, %arg11: memref<1x128xf32, #tpu.memory_space<vmem>>, %arg12: memref<16x128xi32, #tpu.memory_space<vmem>>, %arg13: memref<16x128xi32, #tpu.memory_space<vmem>>) attributes {dimension_semantics = [#tpu.dimension_semantics<parallel>, #tpu.dimension_semantics<parallel>, #tpu.dimension_semantics<arbitrary>], iteration_bounds = array<i64: 2, 2, 2>, scalar_prefetch = 1 : i64, scratch_operands = 4 : i64, tpu.core_type = #tpu.core_type<tc>, window_params = [{transform_indices = @transform_0, window_bounds = array<i64: 1, 1, 128>}, {transform_indices = @transform_1, window_bounds = array<i64: 1, 1, 128>}, {transform_indices = @transform_2, window_bounds = array<i64: 1, 1, 16, 16>}, {transform_indices = @transform_3, window_bounds = array<i64: 1, 1, 16, 16>}, {transform_indices = @transform_4, window_bounds = array<i64: 1, 1, 1, 128>}, {transform_indices = @transform_5, window_bounds = array<i64: 1, 1, 1, 128>}]} {
    %c2_i32 = arith.constant 2 : i32
    %0 = arith.muli %arg0, %c2_i32 : i32
    %1 = arith.addi %0, %arg1 : i32
    %c12_i32 = arith.constant 12 : i32
    %2 = arith.muli %1, %c12_i32 : i32
    %c0_i32 = arith.constant 0 : i32
    %3 = arith.addi %2, %c0_i32 : i32
    %4 = arith.index_cast %3 : i32 to index
    %5 = memref.load %arg3[%4] : memref<48xf32, #tpu.memory_space<smem>>
    %c1_i32 = arith.constant 1 : i32
    %6 = arith.addi %2, %c1_i32 : i32
    %7 = arith.index_cast %6 : i32 to index
    %8 = memref.load %arg3[%7] : memref<48xf32, #tpu.memory_space<smem>>
    %c2_i32_0 = arith.constant 2 : i32
    %9 = arith.addi %2, %c2_i32_0 : i32
    %10 = arith.index_cast %9 : i32 to index
    %11 = memref.load %arg3[%10] : memref<48xf32, #tpu.memory_space<smem>>
    %c3_i32 = arith.constant 3 : i32
    %12 = arith.addi %2, %c3_i32 : i32
    %13 = arith.index_cast %12 : i32 to index
    %14 = memref.load %arg3[%13] : memref<48xf32, #tpu.memory_space<smem>>
    %c4_i32 = arith.constant 4 : i32
    %15 = arith.addi %2, %c4_i32 : i32
    %16 = arith.index_cast %15 : i32 to index
    %17 = memref.load %arg3[%16] : memref<48xf32, #tpu.memory_space<smem>>
    %c5_i32 = arith.constant 5 : i32
    %18 = arith.addi %2, %c5_i32 : i32
    %19 = arith.index_cast %18 : i32 to index
    %20 = memref.load %arg3[%19] : memref<48xf32, #tpu.memory_space<smem>>
    %c6_i32 = arith.constant 6 : i32
    %21 = arith.addi %2, %c6_i32 : i32
    %22 = arith.index_cast %21 : i32 to index
    %23 = memref.load %arg3[%22] : memref<48xf32, #tpu.memory_space<smem>>
    %c7_i32 = arith.constant 7 : i32
    %24 = arith.addi %2, %c7_i32 : i32
    %25 = arith.index_cast %24 : i32 to index
    %26 = memref.load %arg3[%25] : memref<48xf32, #tpu.memory_space<smem>>
    %c8_i32 = arith.constant 8 : i32
    %27 = arith.addi %2, %c8_i32 : i32
    %28 = arith.index_cast %27 : i32 to index
    %29 = memref.load %arg3[%28] : memref<48xf32, #tpu.memory_space<smem>>
    %c9_i32 = arith.constant 9 : i32
    %30 = arith.addi %2, %c9_i32 : i32
    %31 = arith.index_cast %30 : i32 to index
    %32 = memref.load %arg3[%31] : memref<48xf32, #tpu.memory_space<smem>>
    %c10_i32 = arith.constant 10 : i32
    %33 = arith.addi %2, %c10_i32 : i32
    %34 = arith.index_cast %33 : i32 to index
    %35 = memref.load %arg3[%34] : memref<48xf32, #tpu.memory_space<smem>>
    %c11_i32 = arith.constant 11 : i32
    %36 = arith.addi %2, %c11_i32 : i32
    %37 = arith.index_cast %36 : i32 to index
    %38 = memref.load %arg3[%37] : memref<48xf32, #tpu.memory_space<smem>>
    %c0_i32_1 = arith.constant 0 : i32
    %39 = arith.cmpi eq, %arg2, %c0_i32_1 : i32
    %40 = arith.extui %39 : i1 to i32
    %c0_i32_2 = arith.constant 0 : i32
    %41 = arith.cmpi ne, %40, %c0_i32_2 : i32
    scf.if %41 {
      %cst_51 = arith.constant 0.000000e+00 : f32
      %170 = vector.broadcast %cst_51 : f32 to vector<1x128xf32>
      %c0_52 = arith.constant 0 : index
      %c0_53 = arith.constant 0 : index
      %171 = vector.load %arg10[%c0_52, %c0_53] : memref<1x128xf32, #tpu.memory_space<vmem>>, vector<1x128xf32>
      tpu.vector_store %arg10[%c0_52, %c0_53], %170 {strides = array<i32>} : memref<1x128xf32, #tpu.memory_space<vmem>>, vector<1x128xf32>,
      %cst_54 = arith.constant 0.000000e+00 : f32
      %172 = vector.broadcast %cst_54 : f32 to vector<1x128xf32>
      %c0_55 = arith.constant 0 : index
      %c0_56 = arith.constant 0 : index
      %173 = vector.load %arg11[%c0_55, %c0_56] : memref<1x128xf32, #tpu.memory_space<vmem>>, vector<1x128xf32>
      tpu.vector_store %arg11[%c0_55, %c0_56], %172 {strides = array<i32>} : memref<1x128xf32, #tpu.memory_space<vmem>>, vector<1x128xf32>,
      %174 = tpu.iota {dimensions = array<i32: 0>} : vector<16x128xi32>
      %c0_57 = arith.constant 0 : index
      %c0_58 = arith.constant 0 : index
      %175 = vector.load %arg12[%c0_57, %c0_58] : memref<16x128xi32, #tpu.memory_space<vmem>>, vector<16x128xi32>
      tpu.vector_store %arg12[%c0_57, %c0_58], %174 {strides = array<i32>} : memref<16x128xi32, #tpu.memory_space<vmem>>, vector<16x128xi32>,
      %176 = tpu.iota {dimensions = array<i32: 0>} : vector<16x128xi32>
      %c0_59 = arith.constant 0 : index
      %c0_60 = arith.constant 0 : index
      %177 = vector.load %arg13[%c0_59, %c0_60] : memref<16x128xi32, #tpu.memory_space<vmem>>, vector<16x128xi32>
      tpu.vector_store %arg13[%c0_59, %c0_60], %176 {strides = array<i32>} : memref<16x128xi32, #tpu.memory_space<vmem>>, vector<16x128xi32>,
    } else {
    }
    %42 = tpu.iota {dimensions = array<i32: 1>} : vector<1x128xi32>
    %43 = arith.sitofp %42 : vector<1x128xi32> to vector<1x128xf32>
    %cst = arith.constant 5.000000e-01 : f32
    %44 = vector.broadcast %cst : f32 to vector<1x128xf32>
    %45 = arith.addf %43, %44 : vector<1x128xf32>
    %cst_3 = arith.constant 6.250000e-02 : f32
    %46 = vector.broadcast %cst_3 : f32 to vector<1x128xf32>
    %47 = arith.mulf %45, %46 : vector<1x128xf32>
    %48 = math.floor %47 : vector<1x128xf32>
    %49 = arith.fptosi %48 : vector<1x128xf32> to vector<1x128xi32>
    %c16_i32 = arith.constant 16 : i32
    %50 = vector.broadcast %c16_i32 : i32 to vector<1x128xi32>
    %51 = arith.muli %49, %50 : vector<1x128xi32>
    %52 = arith.subi %42, %51 : vector<1x128xi32>
    %53 = arith.sitofp %52 : vector<1x128xi32> to vector<1x128xf32>
    %cst_4 = arith.constant 5.000000e-01 : f32
    %54 = vector.broadcast %cst_4 : f32 to vector<1x128xf32>
    %55 = arith.addf %53, %54 : vector<1x128xf32>
    %c8_i32_5 = arith.constant 8 : i32
    %56 = arith.muli %arg2, %c8_i32_5 : i32
    %57 = vector.broadcast %56 : i32 to vector<1x128xi32>
    %58 = arith.addi %49, %57 : vector<1x128xi32>
    %59 = arith.sitofp %58 : vector<1x128xi32> to vector<1x128xf32>
    %cst_6 = arith.constant 5.000000e-01 : f32
    %60 = vector.broadcast %cst_6 : f32 to vector<1x128xf32>
    %61 = arith.addf %59, %60 : vector<1x128xf32>
    %c0 = arith.constant 0 : index
    %c0_7 = arith.constant 0 : index
    %c0_8 = arith.constant 0 : index
    %62 = vector.load %arg5[%c0, %c0_7, %c0_8] : memref<1x1x128xf32, #tpu.memory_space<vmem>>, vector<1x1x128xf32>
    %63 = vector.shape_cast %62 : vector<1x1x128xf32> to vector<1x128xf32>
    %c0_9 = arith.constant 0 : index
    %c0_10 = arith.constant 0 : index
    %c0_11 = arith.constant 0 : index
    %64 = vector.load %arg4[%c0_9, %c0_10, %c0_11] : memref<1x1x128xf32, #tpu.memory_space<vmem>>, vector<1x1x128xf32>
    %65 = vector.shape_cast %64 : vector<1x1x128xf32> to vector<1x128xf32>
    %c0_12 = arith.constant 0 : index
    %c0_13 = arith.constant 0 : index
    %c0_14 = arith.constant 0 : index
    %c0_15 = arith.constant 0 : index
    %66 = vector.load %arg6[%c0_12, %c0_13, %c0_14, %c0_15] : memref<1x1x16x16xbf16, #tpu.memory_space<vmem>>, vector<1x1x16x16xbf16>
    %67 = vector.shape_cast %66 : vector<1x1x16x16xbf16> to vector<16x16xbf16>
    %c0_16 = arith.constant 0 : index
    %c0_17 = arith.constant 0 : index
    %c0_18 = arith.constant 0 : index
    %c0_19 = arith.constant 0 : index
    %68 = vector.load %arg7[%c0_16, %c0_17, %c0_18, %c0_19] : memref<1x1x16x16xbf16, #tpu.memory_space<vmem>>, vector<1x1x16x16xbf16>
    %69 = vector.shape_cast %68 : vector<1x1x16x16xbf16> to vector<16x16xbf16>
    %70 = vector.broadcast %5 : f32 to vector<1x128xf32>
    %71 = arith.mulf %70, %55 : vector<1x128xf32>
    %72 = vector.broadcast %8 : f32 to vector<1x128xf32>
    %73 = arith.mulf %72, %61 : vector<1x128xf32>
    %74 = arith.addf %71, %73 : vector<1x128xf32>
    %75 = vector.broadcast %11 : f32 to vector<1x128xf32>
    %76 = arith.addf %74, %75 : vector<1x128xf32>
    %77 = vector.broadcast %14 : f32 to vector<1x128xf32>
    %78 = arith.mulf %77, %55 : vector<1x128xf32>
    %79 = vector.broadcast %17 : f32 to vector<1x128xf32>
    %80 = arith.mulf %79, %61 : vector<1x128xf32>
    %81 = arith.addf %78, %80 : vector<1x128xf32>
    %82 = vector.broadcast %20 : f32 to vector<1x128xf32>
    %83 = arith.addf %81, %82 : vector<1x128xf32>
    %84 = vector.broadcast %23 : f32 to vector<1x128xf32>
    %85 = arith.mulf %84, %55 : vector<1x128xf32>
    %86 = vector.broadcast %26 : f32 to vector<1x128xf32>
    %87 = arith.mulf %86, %61 : vector<1x128xf32>
    %88 = arith.addf %85, %87 : vector<1x128xf32>
    %89 = vector.broadcast %29 : f32 to vector<1x128xf32>
    %90 = arith.addf %88, %89 : vector<1x128xf32>
    %91 = arith.mulf %63, %90 : vector<1x128xf32>
    %92 = vector.broadcast %38 : f32 to vector<1x128xf32>
    %93 = arith.addf %91, %92 : vector<1x128xf32>
    %cst_20 = arith.constant 9.99999993E-9 : f32
    %94 = vector.broadcast %cst_20 : f32 to vector<1x128xf32>
    %95 = arith.addf %93, %94 : vector<1x128xf32>
    %cst_21 = arith.constant 1.000000e+00 : f32
    %96 = vector.broadcast %cst_21 : f32 to vector<1x128xf32>
    %97 = arith.divf %96, %95 : vector<1x128xf32>
    %98 = arith.mulf %63, %76 : vector<1x128xf32>
    %99 = vector.broadcast %32 : f32 to vector<1x128xf32>
    %100 = arith.addf %98, %99 : vector<1x128xf32>
    %101 = arith.mulf %100, %97 : vector<1x128xf32>
    %102 = arith.mulf %63, %83 : vector<1x128xf32>
    %103 = vector.broadcast %35 : f32 to vector<1x128xf32>
    %104 = arith.addf %102, %103 : vector<1x128xf32>
    %105 = arith.mulf %104, %97 : vector<1x128xf32>
    %cst_22 = arith.constant 5.000000e-01 : f32
    %106 = vector.broadcast %cst_22 : f32 to vector<1x128xf32>
    %107 = arith.subf %101, %106 : vector<1x128xf32>
    %cst_23 = arith.constant -4.000000e+00 : f32
    %cst_24 = arith.constant 2.000000e+01 : f32
    %108 = vector.broadcast %cst_23 : f32 to vector<1x128xf32>
    %109 = arith.maximumf %108, %107 : vector<1x128xf32>
    %110 = vector.broadcast %cst_24 : f32 to vector<1x128xf32>
    %111 = arith.minimumf %110, %109 : vector<1x128xf32>
    %112 = math.roundeven %111 : vector<1x128xf32>
    %113 = arith.fptosi %112 : vector<1x128xf32> to vector<1x128xi32>
    %cst_25 = arith.constant 5.000000e-01 : f32
    %114 = vector.broadcast %cst_25 : f32 to vector<1x128xf32>
    %115 = arith.subf %105, %114 : vector<1x128xf32>
    %cst_26 = arith.constant -4.000000e+00 : f32
    %cst_27 = arith.constant 2.000000e+01 : f32
    %116 = vector.broadcast %cst_26 : f32 to vector<1x128xf32>
    %117 = arith.maximumf %116, %115 : vector<1x128xf32>
    %118 = vector.broadcast %cst_27 : f32 to vector<1x128xf32>
    %119 = arith.minimumf %118, %117 : vector<1x128xf32>
    %120 = math.roundeven %119 : vector<1x128xf32>
    %121 = arith.fptosi %120 : vector<1x128xf32> to vector<1x128xi32>
    %c0_28 = arith.constant 0 : index
    %c0_29 = arith.constant 0 : index
    %122 = vector.load %arg13[%c0_28, %c0_29] : memref<16x128xi32, #tpu.memory_space<vmem>>, vector<16x128xi32>
    %123 = vector.broadcast %113 : vector<1x128xi32> to vector<16x128xi32>
    %124 = arith.cmpi eq, %122, %123 : vector<16x128xi32>
    %125 = arith.extui %124 : vector<16x128xi1> to vector<16x128xi32>
    %126 = arith.sitofp %125 : vector<16x128xi32> to vector<16x128xf32>
    %127 = arith.truncf %126 : vector<16x128xf32> to vector<16x128xbf16>
    %cst_30 = arith.constant dense<0.000000e+00> : vector<16x128xf32>
    %128 = tpu.matmul %67, %127, %cst_30 {dimension_numbers = #tpu.dot_dimension_numbers<[1], [0], [0], [1], [0, 0, 1, 1], [], []>} : vector<16x16xbf16>, vector<16x128xbf16>, vector<16x128xf32> -> vector<16x128xf32>
    %cst_31 = arith.constant dense<0.000000e+00> : vector<16x128xf32>
    %129 = tpu.matmul %69, %127, %cst_31 {dimension_numbers = #tpu.dot_dimension_numbers<[1], [0], [0], [1], [0, 0, 1, 1], [], []>} : vector<16x16xbf16>, vector<16x128xbf16>, vector<16x128xf32> -> vector<16x128xf32>
    %130 = arith.addf %128, %129 : vector<16x128xf32>
    %c0_32 = arith.constant 0 : index
    %c0_33 = arith.constant 0 : index
    %131 = vector.load %arg12[%c0_32, %c0_33] : memref<16x128xi32, #tpu.memory_space<vmem>>, vector<16x128xi32>
    %132 = vector.broadcast %121 : vector<1x128xi32> to vector<16x128xi32>
    %133 = arith.cmpi eq, %131, %132 : vector<16x128xi32>
    %cst_34 = arith.constant 0.000000e+00 : f32
    %134 = vector.broadcast %cst_34 : f32 to vector<16x128xf32>
    %135 = arith.select %133, %130, %134 : vector<16x128xi1>, vector<16x128xf32>
    %cst_35 = arith.constant dense<0.000000e+00> : vector<128xf32>
    %136 = vector.multi_reduction <add>, %135, %cst_35 [0] : vector<16x128xf32> to vector<128xf32>
    %137 = vector.shape_cast %136 : vector<128xf32> to vector<1x128xf32>
    %cst_36 = arith.constant 1.050000e+00 : f32
    %138 = vector.broadcast %cst_36 : f32 to vector<1x128xf32>
    %139 = arith.mulf %138, %137 : vector<1x128xf32>
    %140 = arith.cmpf olt, %93, %139 : vector<1x128xf32>
    %cst_37 = arith.constant 0.000000e+00 : f32
    %141 = vector.broadcast %cst_37 : f32 to vector<1x128xf32>
    %142 = arith.cmpf ogt, %93, %141 : vector<1x128xf32>
    %143 = arith.andi %140, %142 : vector<1x128xi1>
    %cst_38 = arith.constant 0.000000e+00 : f32
    %144 = vector.broadcast %cst_38 : f32 to vector<1x128xf32>
    %145 = arith.cmpf ogt, %137, %144 : vector<1x128xf32>
    %146 = arith.andi %143, %145 : vector<1x128xi1>
    %147 = arith.mulf %65, %90 : vector<1x128xf32>
    %148 = vector.broadcast %38 : f32 to vector<1x128xf32>
    %149 = arith.addf %147, %148 : vector<1x128xf32>
    %150 = math.log %137 : vector<1x128xf32>
    %151 = math.log %149 : vector<1x128xf32>
    %152 = arith.subf %150, %151 : vector<1x128xf32>
    %153 = math.absf %152 : vector<1x128xf32>
    %154 = arith.cmpf one, %153, %153 : vector<1x128xf32>
    %cst_39 = arith.constant dense<true> : vector<1x128xi1>
    %155 = arith.xori %154, %cst_39 : vector<1x128xi1>
    %156 = arith.andi %146, %155 : vector<1x128xi1>
    %c0_40 = arith.constant 0 : index
    %c0_41 = arith.constant 0 : index
    %157 = vector.load %arg10[%c0_40, %c0_41] : memref<1x128xf32, #tpu.memory_space<vmem>>, vector<1x128xf32>
    %cst_42 = arith.constant 0.000000e+00 : f32
    %158 = vector.broadcast %cst_42 : f32 to vector<1x128xf32>
    %159 = arith.select %156, %153, %158 : vector<1x128xi1>, vector<1x128xf32>
    %160 = arith.addf %157, %159 : vector<1x128xf32>
    %c0_43 = arith.constant 0 : index
    %c0_44 = arith.constant 0 : index
    %161 = vector.load %arg10[%c0_43, %c0_44] : memref<1x128xf32, #tpu.memory_space<vmem>>, vector<1x128xf32>
    tpu.vector_store %arg10[%c0_43, %c0_44], %160 {strides = array<i32>} : memref<1x128xf32, #tpu.memory_space<vmem>>, vector<1x128xf32>,
    %c0_45 = arith.constant 0 : index
    %c0_46 = arith.constant 0 : index
    %162 = vector.load %arg11[%c0_45, %c0_46] : memref<1x128xf32, #tpu.memory_space<vmem>>, vector<1x128xf32>
    %163 = arith.extui %156 : vector<1x128xi1> to vector<1x128xi32>
    %164 = arith.sitofp %163 : vector<1x128xi32> to vector<1x128xf32>
    %165 = arith.addf %162, %164 : vector<1x128xf32>
    %c0_47 = arith.constant 0 : index
    %c0_48 = arith.constant 0 : index
    %166 = vector.load %arg11[%c0_47, %c0_48] : memref<1x128xf32, #tpu.memory_space<vmem>>, vector<1x128xf32>
    tpu.vector_store %arg11[%c0_47, %c0_48], %165 {strides = array<i32>} : memref<1x128xf32, #tpu.memory_space<vmem>>, vector<1x128xf32>,
    %c1_i32_49 = arith.constant 1 : i32
    %167 = arith.cmpi eq, %arg2, %c1_i32_49 : i32
    %168 = arith.extui %167 : i1 to i32
    %c0_i32_50 = arith.constant 0 : i32
    %169 = arith.cmpi ne, %168, %c0_i32_50 : i32
    scf.if %169 {
      %c0_51 = arith.constant 0 : index
      %c0_52 = arith.constant 0 : index
      %170 = vector.load %arg10[%c0_51, %c0_52] : memref<1x128xf32, #tpu.memory_space<vmem>>, vector<1x128xf32>
      %171 = vector.shape_cast %170 : vector<1x128xf32> to vector<1x1x128xf32>
      %cst_53 = arith.constant dense<0.000000e+00> : vector<1xf32>
      %172 = vector.multi_reduction <add>, %171, %cst_53 [1, 2] : vector<1x1x128xf32> to vector<1xf32>
      %173 = vector.shape_cast %172 : vector<1xf32> to vector<1x1x1xf32>
      %174 = vector.extract %173[0, 0, 0] : f32 from vector<1x1x1xf32>
      %175 = vector.broadcast %174 : f32 to vector<1x1x1x128xf32>
      %c0_54 = arith.constant 0 : index
      %c0_55 = arith.constant 0 : index
      %c0_56 = arith.constant 0 : index
      %c0_57 = arith.constant 0 : index
      %176 = vector.load %arg8[%c0_54, %c0_55, %c0_56, %c0_57] : memref<1x1x1x128xf32, #tpu.memory_space<vmem>>, vector<1x1x1x128xf32>
      tpu.vector_store %arg8[%c0_54, %c0_55, %c0_56, %c0_57], %175 {strides = array<i32>} : memref<1x1x1x128xf32, #tpu.memory_space<vmem>>, vector<1x1x1x128xf32>,
      %c0_58 = arith.constant 0 : index
      %c0_59 = arith.constant 0 : index
      %177 = vector.load %arg11[%c0_58, %c0_59] : memref<1x128xf32, #tpu.memory_space<vmem>>, vector<1x128xf32>
      %178 = vector.shape_cast %177 : vector<1x128xf32> to vector<1x1x128xf32>
      %cst_60 = arith.constant dense<0.000000e+00> : vector<1xf32>
      %179 = vector.multi_reduction <add>, %178, %cst_60 [1, 2] : vector<1x1x128xf32> to vector<1xf32>
      %180 = vector.shape_cast %179 : vector<1xf32> to vector<1x1x1xf32>
      %181 = vector.extract %180[0, 0, 0] : f32 from vector<1x1x1xf32>
      %182 = vector.broadcast %181 : f32 to vector<1x1x1x128xf32>
      %c0_61 = arith.constant 0 : index
      %c0_62 = arith.constant 0 : index
      %c0_63 = arith.constant 0 : index
      %c0_64 = arith.constant 0 : index
      %183 = vector.load %arg9[%c0_61, %c0_62, %c0_63, %c0_64] : memref<1x1x1x128xf32, #tpu.memory_space<vmem>>, vector<1x1x1x128xf32>
      tpu.vector_store %arg9[%c0_61, %c0_62, %c0_63, %c0_64], %182 {strides = array<i32>} : memref<1x1x1x128xf32, #tpu.memory_space<vmem>>, vector<1x1x1x128xf32>,
    } else {
    }
    return
  }
  func.func @transform_0(%arg0: i32, %arg1: i32, %arg2: i32, %arg3: memref<48xf32, #tpu.memory_space<smem>>) -> (i32, i32, i32) {
    %c0_i32 = arith.constant 0 : i32
    %c0_i32_0 = arith.constant 0 : i32
    return %arg0, %c0_i32, %arg2 : i32, i32, i32
  }
  func.func @transform_1(%arg0: i32, %arg1: i32, %arg2: i32, %arg3: memref<48xf32, #tpu.memory_space<smem>>) -> (i32, i32, i32) {
    %c0_i32 = arith.constant 0 : i32
    %c0_i32_0 = arith.constant 0 : i32
    return %arg0, %c0_i32, %arg2 : i32, i32, i32
  }
  func.func @transform_2(%arg0: i32, %arg1: i32, %arg2: i32, %arg3: memref<48xf32, #tpu.memory_space<smem>>) -> (i32, i32, i32, i32) {
    %c0_i32 = arith.constant 0 : i32
    %c0_i32_0 = arith.constant 0 : i32
    %c0_i32_1 = arith.constant 0 : i32
    return %arg0, %arg1, %c0_i32, %c0_i32_0 : i32, i32, i32, i32
  }
  func.func @transform_3(%arg0: i32, %arg1: i32, %arg2: i32, %arg3: memref<48xf32, #tpu.memory_space<smem>>) -> (i32, i32, i32, i32) {
    %c0_i32 = arith.constant 0 : i32
    %c0_i32_0 = arith.constant 0 : i32
    %c0_i32_1 = arith.constant 0 : i32
    return %arg0, %arg1, %c0_i32, %c0_i32_0 : i32, i32, i32, i32
  }
  func.func @transform_4(%arg0: i32, %arg1: i32, %arg2: i32, %arg3: memref<48xf32, #tpu.memory_space<smem>>) -> (i32, i32, i32, i32) {
    %c0_i32 = arith.constant 0 : i32
    %c0_i32_0 = arith.constant 0 : i32
    %c0_i32_1 = arith.constant 0 : i32
    return %arg0, %arg1, %c0_i32, %c0_i32_0 : i32, i32, i32, i32
  }
  func.func @transform_5(%arg0: i32, %arg1: i32, %arg2: i32, %arg3: memref<48xf32, #tpu.memory_space<smem>>) -> (i32, i32, i32, i32) {
    %c0_i32 = arith.constant 0 : i32
    %c0_i32_0 = arith.constant 0 : i32
    %c0_i32_1 = arith.constant 0 : i32
    return %arg0, %arg1, %c0_i32, %c0_i32_0 : i32, i32, i32, i32
  }
}

</mosaic_0001>

<llo_original>
// kernel: tpu_custom_call.1
$region0: #{tpu_custom_call.1}
  #allocation0 [shape = 'u32[]', space=smem, size = 0x4, offset = 0x4, fixed_abs, tag = 'smem constant byte address 0x4 - core index']
  #allocation1 [shape = 'u32[144,128]{1,0:T(1,128)}', space=vmem, size = 0x12000, scoped, tag = 'internal scratch']
  #allocation2 [shape = 'f32[1,128]{1,0:T(1,128)}', space=vmem, size = 0x200, scoped, tag = 'scratch operand']
  #allocation3 [shape = 'f32[1,128]{1,0:T(1,128)}', space=vmem, size = 0x200, scoped, tag = 'scratch operand']
  #allocation4 [shape = 's32[16,128]{1,0:T(8,128)}', space=vmem, size = 0x2000, scoped, tag = 'scratch operand']
  #allocation5 [shape = 's32[16,128]{1,0:T(8,128)}', space=vmem, size = 0x2000, scoped, tag = 'scratch operand']
  #allocation6 [shape = 's32[1]{0}', space=sflag, size = 0x4, scoped, tag = 'scoped memory for tpu_custom_call.1']
  #allocation7 [shape = 'u8[512]{0}', space=smem, size = 0x200, scoped, tag = 'prefetched SMEM operand 0']
  %s0 = inlined_call_operand.hbm [shape: f32[48], index: 0, kind: input, shape index: {}]
  %s1 = inlined_call_operand.hbm [shape: f32[2,1,256], index: 1, kind: input, shape index: {}]
  %s2 = inlined_call_operand.vmem [shape: f32[2,1,256], index: 2, kind: input, shape index: {}]
  %s3 = inlined_call_operand.hbm [shape: bf16[2,2,16,16], index: 3, kind: input, shape index: {}]
  %s4 = inlined_call_operand.hbm [shape: bf16[2,2,16,16], index: 4, kind: input, shape index: {}]
  %s5 = inlined_call_operand.hbm [shape: f32[2,2,1,128], index: 5, kind: output, shape index: {0}]
  %s6 = inlined_call_operand.hbm [shape: f32[2,2,1,128], index: 6, kind: output, shape index: {1}]
  %7 = xla_tuple %s5, %s6
  %s8 = sld [smem:[#allocation0]]
  $region77: #{tpu_custom_call.1} parent=0
    _
  %s10 = ssub.s32 1, %s8
  %s11 = scalar_select 0, %s10, %s8
  %13 = dma.hbm_to_smem %s0, 16, [#allocation7], [#allocation6]
  %14 = dma.done [#allocation6], 16
  %15 = sfence
  $region1: #{tpu_custom_call.1} parent=0
    #allocation8 [shape = 'u8[1024]{0}', space=vmem, size = 0x400, scoped, tag = 'input window, operand 1']
    #allocation9 [shape = 's32[2]{0}', space=sflag, size = 0x8, scoped, tag = 'scoped memory for tpu_custom_call.1']
    #allocation10 [shape = 's32[2]{0}', space=sflag, size = 0x8, scoped, tag = 'scoped memory for tpu_custom_call.1']
    #allocation11 [shape = 'u8[8192]{0}', space=vmem, size = 0x2000, scoped, tag = 'input window, operand 3']
    #allocation12 [shape = 's32[2]{0}', space=sflag, size = 0x8, scoped, tag = 'scoped memory for tpu_custom_call.1']
    #allocation13 [shape = 'u8[8192]{0}', space=vmem, size = 0x2000, scoped, tag = 'input window, operand 4']
    #allocation14 [shape = 'u8[1024]{0}', space=vmem, size = 0x400, scoped, tag = 'output window, operand 0']
    #allocation15 [shape = 'u8[1024]{0}', space=vmem, size = 0x400, scoped, tag = 'output window, operand 1']
    #allocation16 [shape = 's32[2]{0}', space=sflag, size = 0x8, scoped, tag = 'scoped memory for tpu_custom_call.1']
    %16 = vsyncpa [#allocation9], 0
    %s17 = scalar_lea.sflag [#allocation9], 1
    %18 = vsyncpa %s17, 0
    %19 = vsyncpa [#allocation12], 0
    %s20 = scalar_lea.sflag [#allocation12], 1
    %21 = vsyncpa %s20, 0
    %22 = vsyncpa [#allocation10], 0
    %s23 = scalar_lea.sflag [#allocation10], 1
    %24 = vsyncpa %s23, 0
    %25 = vsyncpa [#allocation16], 0
    %s26 = scalar_lea.sflag [#allocation16], 1
    %27 = vsyncpa %s26, 0
    loop: start=0, step=1, limit=10
    $region2: #{tpu_custom_call.1} parent=1 // loop_pre_header
      _
    $region3: #{tpu_custom_call.1} parent=1 // loop_header
      %s29 = sphi 0, %s33
      %p30 = scmp.ge.s32.totalorder %s29, 10
      %s36 = sphi 0, %s55
      %s37 = sphi 0, %s51
      %s38 = sphi 0, %s47
      %s39 = sphi 0, %s36
      %s40 = sphi 0, %s37
      %s41 = sphi 0, %s38
      %s42 = sphi 0, %s39
      %s43 = sphi 0, %s40
      %s44 = sphi 0, %s41
      %s60 = sphi 0, %s62
      %s63 = sphi 0, %s60
      %s64 = sphi 0, %s63
      %s80 = sphi 0, %s64
      %s88 = sphi 0, %s90
      %s91 = sphi 0, %s88
      %s92 = sphi 0, %s91
      %s108 = sphi 0, %s92
      %s116 = sphi 0, %s118
      %s119 = sphi 0, %s116
      %s120 = sphi 0, %s119
      %s136 = sphi 0, %s120
      %s144 = sphi 0, %s146
      %s147 = sphi 0, %s144
      %s148 = sphi 0, %s147
      %s164 = sphi 0, %s148
      %s172 = sphi 0, %s174
      %s175 = sphi 0, %s172
      %s176 = sphi 0, %s175
      %s192 = sphi 0, %s176
      %s200 = sphi 0, %s202
      %s203 = sphi 0, %s200
      %s204 = sphi 0, %s203
      %s220 = sphi 0, %s204
    $region4: #{tpu_custom_call.1} parent=1 // loop_header_branch
      %32 = sbr.rel (%p30) target = $region8
    $region5: #{tpu_custom_call.1} parent=1 // loop_body
      %s34 = ssub.s32 %s29, 1
      %s35 = ssub.s32 %s29, 2
      %s45 = sadd.s32 1, %s38
      %p46 = scmp.ge.s32.totalorder %s45, 2
      %s47 = scalar_select %p46, 0, %s45
      %s48 = sadd.s32 1, %s37
      %s49 = scalar_select %p46, %s48, %s37
      %p50 = scmp.ge.s32.totalorder %s49, 2
      %s51 = scalar_select %p50, 0, %s49
      %s52 = sadd.s32 1, %s36
      %s53 = scalar_select %p50, %s52, %s36
      %p54 = scmp.ge.s32.totalorder %s53, 2
      %s55 = scalar_select %p54, 0, %s53
      %s56 = ssub.s32 %s36, %s55
      %s57 = ssub.s32 %s38, %s47
      %s58 = sor.u32 %s56, %s57
      %p59 = scmp.eq.s32.totalorder %s58, 0
      %s61 = sadd.s32 %s60, 1
      %s62 = scalar_select %p59, %s60, %s61
      %p65 = pneg %p59
      %p66 = scmp.eq.s32.totalorder %s29, 7
      %p67 = por %p65, %p66
      %p68 = scmp.ne.s32.totalorder %s60, %s63
      %p69 = scmp.eq.s32.totalorder %s29, 0
      %p70 = por %p68, %p69
      %p71 = scmp.ne.s32.totalorder %s60, %s63
      %p72 = scmp.eq.s32.totalorder %s34, 7
      %p73 = por %p71, %p72
      %p74 = scmp.ne.s32.totalorder %s63, %s64
      %p75 = scmp.eq.s32.totalorder %s34, 0
      %p76 = por %p74, %p75
      %p77 = scmp.ne.s32.totalorder %s63, %s64
      %p78 = scmp.eq.s32.totalorder %s35, 7
      %p79 = por %p77, %p78
      %p81 = scmp.ne.s32.totalorder %s64, %s80
      %p82 = scmp.eq.s32.totalorder %s35, 0
      %p83 = por %p81, %p82
      %s84 = ssub.s32 %s36, %s55
      %s85 = ssub.s32 %s38, %s47
      %s86 = sor.u32 %s84, %s85
      %p87 = scmp.eq.s32.totalorder %s86, 0
      %s89 = sadd.s32 %s88, 1
      %s90 = scalar_select %p87, %s88, %s89
      %p93 = pneg %p87
      %p94 = scmp.eq.s32.totalorder %s29, 7
      %p95 = por %p93, %p94
      %p96 = scmp.ne.s32.totalorder %s88, %s91
      %p97 = scmp.eq.s32.totalorder %s29, 0
      %p98 = por %p96, %p97
      %p99 = scmp.ne.s32.totalorder %s88, %s91
      %p100 = scmp.eq.s32.totalorder %s34, 7
      %p101 = por %p99, %p100
      %p102 = scmp.ne.s32.totalorder %s91, %s92
      %p103 = scmp.eq.s32.totalorder %s34, 0
      %p104 = por %p102, %p103
      %p105 = scmp.ne.s32.totalorder %s91, %s92
      %p106 = scmp.eq.s32.totalorder %s35, 7
      %p107 = por %p105, %p106
      %p109 = scmp.ne.s32.totalorder %s92, %s108
      %p110 = scmp.eq.s32.totalorder %s35, 0
      %p111 = por %p109, %p110
      %s112 = ssub.s32 %s36, %s55
      %s113 = ssub.s32 %s37, %s51
      %s114 = sor.u32 %s112, %s113
      %p115 = scmp.eq.s32.totalorder %s114, 0
      %s117 = sadd.s32 %s116, 1
      %s118 = scalar_select %p115, %s116, %s117
      %p121 = pneg %p115
      %p122 = scmp.eq.s32.totalorder %s29, 7
      %p123 = por %p121, %p122
      %p124 = scmp.ne.s32.totalorder %s116, %s119
      %p125 = scmp.eq.s32.totalorder %s29, 0
      %p126 = por %p124, %p125
      %p127 = scmp.ne.s32.totalorder %s116, %s119
      %p128 = scmp.eq.s32.totalorder %s34, 7
      %p129 = por %p127, %p128
      %p130 = scmp.ne.s32.totalorder %s119, %s120
      %p131 = scmp.eq.s32.totalorder %s34, 0
      %p132 = por %p130, %p131
      %p133 = scmp.ne.s32.totalorder %s119, %s120
      %p134 = scmp.eq.s32.totalorder %s35, 7
      %p135 = por %p133, %p134
      %p137 = scmp.ne.s32.totalorder %s120, %s136
      %p138 = scmp.eq.s32.totalorder %s35, 0
      %p139 = por %p137, %p138
      %s140 = ssub.s32 %s36, %s55
      %s141 = ssub.s32 %s37, %s51
      %s142 = sor.u32 %s140, %s141
      %p143 = scmp.eq.s32.totalorder %s142, 0
      %s145 = sadd.s32 %s144, 1
      %s146 = scalar_select %p143, %s144, %s145
      %p149 = pneg %p143
      %p150 = scmp.eq.s32.totalorder %s29, 7
      %p151 = por %p149, %p150
      %p152 = scmp.ne.s32.totalorder %s144, %s147
      %p153 = scmp.eq.s32.totalorder %s29, 0
      %p154 = por %p152, %p153
      %p155 = scmp.ne.s32.totalorder %s144, %s147
      %p156 = scmp.eq.s32.totalorder %s34, 7
      %p157 = por %p155, %p156
      %p158 = scmp.ne.s32.totalorder %s147, %s148
      %p159 = scmp.eq.s32.totalorder %s34, 0
      %p160 = por %p158, %p159
      %p161 = scmp.ne.s32.totalorder %s147, %s148
      %p162 = scmp.eq.s32.totalorder %s35, 7
      %p163 = por %p161, %p162
      %p165 = scmp.ne.s32.totalorder %s148, %s164
      %p166 = scmp.eq.s32.totalorder %s35, 0
      %p167 = por %p165, %p166
      %s168 = ssub.s32 %s36, %s55
      %s169 = ssub.s32 %s37, %s51
      %s170 = sor.u32 %s168, %s169
      %p171 = scmp.eq.s32.totalorder %s170, 0
      %s173 = sadd.s32 %s172, 1
      %s174 = scalar_select %p171, %s172, %s173
      %p177 = pneg %p171
      %p178 = scmp.eq.s32.totalorder %s29, 7
      %p179 = por %p177, %p178
      %p180 = scmp.ne.s32.totalorder %s172, %s175
      %p181 = scmp.eq.s32.totalorder %s29, 0
      %p182 = por %p180, %p181
      %p183 = scmp.ne.s32.totalorder %s172, %s175
      %p184 = scmp.eq.s32.totalorder %s34, 7
      %p185 = por %p183, %p184
      %p186 = scmp.ne.s32.totalorder %s175, %s176
      %p187 = scmp.eq.s32.totalorder %s34, 0
      %p188 = por %p186, %p187
      %p189 = scmp.ne.s32.totalorder %s175, %s176
      %p190 = scmp.eq.s32.totalorder %s35, 7
      %p191 = por %p189, %p190
      %p193 = scmp.ne.s32.totalorder %s176, %s192
      %p194 = scmp.eq.s32.totalorder %s35, 0
      %p195 = por %p193, %p194
      %s196 = ssub.s32 %s36, %s55
      %s197 = ssub.s32 %s37, %s51
      %s198 = sor.u32 %s196, %s197
      %p199 = scmp.eq.s32.totalorder %s198, 0
      %s201 = sadd.s32 %s200, 1
      %s202 = scalar_select %p199, %s200, %s201
      %p205 = pneg %p199
      %p206 = scmp.eq.s32.totalorder %s29, 7
      %p207 = por %p205, %p206
      %p208 = scmp.ne.s32.totalorder %s200, %s203
      %p209 = scmp.eq.s32.totalorder %s29, 0
      %p210 = por %p208, %p209
      %p211 = scmp.ne.s32.totalorder %s200, %s203
      %p212 = scmp.eq.s32.totalorder %s34, 7
      %p213 = por %p211, %p212
      %p214 = scmp.ne.s32.totalorder %s203, %s204
      %p215 = scmp.eq.s32.totalorder %s34, 0
      %p216 = por %p214, %p215
      %p217 = scmp.ne.s32.totalorder %s203, %s204
      %p218 = scmp.eq.s32.totalorder %s35, 7
      %p219 = por %p217, %p218
      %p221 = scmp.ne.s32.totalorder %s204, %s220
      %p222 = scmp.eq.s32.totalorder %s35, 0
      %p223 = por %p221, %p222
      %p224 = scmp.le.s32.totalorder 1, %s29
      %p225 = scmp.lt.s32.totalorder %s29, 9
      %p226 = pnand %p224, %p225
      %p227 = pneg %p226
      // Predicated region
      $region9: #{tpu_custom_call.1} parent=5 // pred_check
        _
      $region10: #{tpu_custom_call.1} parent=5 // pred_check_branch
        %229 = sbr.rel (%p226) target = $region12
      $region11: #{tpu_custom_call.1} parent=5 // pred_region
        %s230 = ssub.s32 %s29, 1
      $region12: #{tpu_custom_call.1} parent=5 // pred_fallthru
        _
      %p231 = scmp.lt.s32.totalorder %s29, 8
      // Predicated region
      $region13: #{tpu_custom_call.1} parent=5 // pred_check
        %p232 = pneg %p231
      $region14: #{tpu_custom_call.1} parent=5 // pred_check_branch
        %234 = sbr.rel (%p232) target = $region16
      $region15: #{tpu_custom_call.1} parent=5 // pred_region
        // Predicated region
        $region17: #{tpu_custom_call.1} parent=15 // pred_check
          %p235 = pneg %p70
        $region18: #{tpu_custom_call.1} parent=15 // pred_check_branch
          %237 = sbr.rel (%p235) target = $region20
        $region19: #{tpu_custom_call.1} parent=15 // pred_region
          %s238 = sand.u32 %s60, 1
          %s239 = scalar_lea.sflag [#allocation9], %s238
          %s240 = sand.u32 %s60, 1
          %s241 = scalar_lea.vmem [#allocation8], %s240
          %s243 = ssub.s32 16, 16
          %244 = vsyncadd %s239, %s243
          %s245 = smul.addr %s36, 2
          %s246 = sadd.s32 %s38, %s245
          %s247 = smul.addr %s246, 16
          %s248 = scalar_lea.hbm %s1, %s247
          %s250 = sshll.u32 %s241, 4
          %s251 = int_to_ptr.vmem [resolvable:$true] %s250
          %253 = dma.hbm_to_vmem [thread:$0]  %s248, 16, %s251, %s239
        $region20: #{tpu_custom_call.1} parent=15 // pred_fallthru
          _
        // Predicated region
        $region21: #{tpu_custom_call.1} parent=15 // pred_check
          %p254 = pneg %p98
        $region22: #{tpu_custom_call.1} parent=15 // pred_check_branch
          %256 = sbr.rel (%p254) target = $region24
        $region23: #{tpu_custom_call.1} parent=15 // pred_region
          %p257 = scmp.lt.s32.totalorder %s36, 1
          %s258 = scalar_select %p257, %s36, 1
          %p259 = scmp.lt.s32.totalorder %s38, 1
          %s260 = scalar_select %p259, %s38, 1
          %s261 = smul.addr %s258, 2
          %s262 = sadd.s32 %s260, %s261
          %s263 = scalar_lea.vmem %s2, %s262
        $region24: #{tpu_custom_call.1} parent=15 // pred_fallthru
          _
        // Predicated region
        $region25: #{tpu_custom_call.1} parent=15 // pred_check
          %p264 = pneg %p126
        $region26: #{tpu_custom_call.1} parent=15 // pred_check_branch
          %266 = sbr.rel (%p264) target = $region28
        $region27: #{tpu_custom_call.1} parent=15 // pred_region
          %s267 = sand.u32 %s29, 1
          %s268 = scalar_lea.sflag [#allocation12], %s267
          %s269 = sand.u32 %s116, 1
          %s270 = smul.addr %s269, 8
          %s271 = scalar_lea.vmem [#allocation11], %s270
          %s273 = ssub.s32 128, 128
          %274 = vsyncadd %s268, %s273
          %s275 = smul.addr %s37, 2
          %s276 = smul.addr %s36, 4
          %s277 = sadd.s32 %s275, %s276
          %s278 = smul.addr %s277, 64
          %s279 = scalar_lea.hbm %s3, %s278
          %s280 = sshll.u32 %s271, 4
          %s281 = int_to_ptr.vmem [resolvable:$true] %s280
          %286 = dma.hbm_to_vmem [thread:$0]  %s279, 128, %s281, %s268, 64, 64, 4
        $region28: #{tpu_custom_call.1} parent=15 // pred_fallthru
          _
        // Predicated region
        $region29: #{tpu_custom_call.1} parent=15 // pred_check
          %p287 = pneg %p154
        $region30: #{tpu_custom_call.1} parent=15 // pred_check_branch
          %289 = sbr.rel (%p287) target = $region32
        $region31: #{tpu_custom_call.1} parent=15 // pred_region
          %s290 = sand.u32 %s29, 1
          %s291 = scalar_lea.sflag [#allocation12], %s290
          %s292 = sand.u32 %s144, 1
          %s293 = smul.addr %s292, 8
          %s294 = scalar_lea.vmem [#allocation13], %s293
          %s296 = ssub.s32 128, 128
          %297 = vsyncadd %s291, %s296
          %s298 = smul.addr %s37, 2
          %s299 = smul.addr %s36, 4
          %s300 = sadd.s32 %s298, %s299
          %s301 = smul.addr %s300, 64
          %s302 = scalar_lea.hbm %s4, %s301
          %s303 = sshll.u32 %s294, 4
          %s304 = int_to_ptr.vmem [resolvable:$true] %s303
          %309 = dma.hbm_to_vmem [thread:$0]  %s302, 128, %s304, %s291, 64, 64, 4
        $region32: #{tpu_custom_call.1} parent=15 // pred_fallthru
          _
      $region16: #{tpu_custom_call.1} parent=5 // pred_fallthru
        _
      %p310 = scmp.le.s32.totalorder 1, %s29
      %p311 = scmp.lt.s32.totalorder %s29, 9
      %p312 = pnand %p310, %p311
      %p313 = pneg %p312
      // Predicated region
      $region33: #{tpu_custom_call.1} parent=5 // pred_check
        _
      $region34: #{tpu_custom_call.1} parent=5 // pred_check_branch
        %315 = sbr.rel (%p312) target = $region36
      $region35: #{tpu_custom_call.1} parent=5 // pred_region
        %s316 = ssub.s32 %s29, 1
        %s317 = sand.u32 %s63, 1
        %s318 = scalar_lea.sflag [#allocation9], %s317
        %s319 = sand.u32 %s63, 1
        %s320 = scalar_lea.vmem [#allocation8], %s319
        // Predicated region
        $region37: #{tpu_custom_call.1} parent=35 // pred_check
          %p321 = pneg %p76
        $region38: #{tpu_custom_call.1} parent=35 // pred_check_branch
          %323 = sbr.rel (%p321) target = $region40
        $region39: #{tpu_custom_call.1} parent=35 // pred_region
          %324 = dma.done %s318, 16
        $region40: #{tpu_custom_call.1} parent=35 // pred_fallthru
          _
        %s325 = sand.u32 %s34, 1
        %s326 = scalar_lea.sflag [#allocation12], %s325
        %s327 = sand.u32 %s119, 1
        %s328 = smul.addr %s327, 8
        %s329 = scalar_lea.vmem [#allocation11], %s328
        // Predicated region
        $region41: #{tpu_custom_call.1} parent=35 // pred_check
          %p330 = pneg %p132
        $region42: #{tpu_custom_call.1} parent=35 // pred_check_branch
          %332 = sbr.rel (%p330) target = $region44
        $region43: #{tpu_custom_call.1} parent=35 // pred_region
          %333 = dma.done %s326, 128
        $region44: #{tpu_custom_call.1} parent=35 // pred_fallthru
          _
        %s334 = sand.u32 %s34, 1
        %s335 = scalar_lea.sflag [#allocation12], %s334
        %s336 = sand.u32 %s147, 1
        %s337 = smul.addr %s336, 8
        %s338 = scalar_lea.vmem [#allocation13], %s337
        // Predicated region
        $region45: #{tpu_custom_call.1} parent=35 // pred_check
          %p339 = pneg %p160
        $region46: #{tpu_custom_call.1} parent=35 // pred_check_branch
          %341 = sbr.rel (%p339) target = $region48
        $region47: #{tpu_custom_call.1} parent=35 // pred_region
          %342 = dma.done %s335, 128
        $region48: #{tpu_custom_call.1} parent=35 // pred_fallthru
          _
        %s343 = sand.u32 %s63, 1
        %s344 = scalar_lea.sflag [#allocation9], %s343
        %s345 = sand.u32 %s63, 1
        %s346 = scalar_lea.vmem [#allocation8], %s345
        %p347 = pneg %p76
        %p348 = pneg %p73
        %p349 = scmp.lt.s32.totalorder %s39, 1
        %s350 = scalar_select %p349, %s39, 1
        %p351 = scmp.lt.s32.totalorder %s41, 1
        %s352 = scalar_select %p351, %s41, 1
        %s353 = smul.addr %s350, 2
        %s354 = sadd.s32 %s352, %s353
        %s355 = scalar_lea.vmem %s2, %s354
        %p356 = pneg %p104
        %p357 = pneg %p101
        %s358 = sand.u32 %s34, 1
        %s359 = scalar_lea.sflag [#allocation12], %s358
        %s360 = sand.u32 %s119, 1
        %s361 = smul.addr %s360, 8
        %s362 = scalar_lea.vmem [#allocation11], %s361
        %p363 = pneg %p132
        %p364 = pneg %p129
        %s365 = sand.u32 %s34, 1
        %s366 = scalar_lea.sflag [#allocation12], %s365
        %s367 = sand.u32 %s147, 1
        %s368 = smul.addr %s367, 8
        %s369 = scalar_lea.vmem [#allocation13], %s368
        %p370 = pneg %p160
        %p371 = pneg %p157
        %p372 = pneg %p188
        %p373 = pneg %p185
        %s374 = sand.u32 %s175, 1
        %s375 = scalar_lea.sflag [#allocation10], %s374
        %s376 = sand.u32 %s175, 1
        %s377 = scalar_lea.vmem [#allocation14], %s376
        %p378 = pneg %p216
        %p379 = pneg %p213
        %s380 = sand.u32 %s203, 1
        %s381 = scalar_lea.sflag [#allocation16], %s380
        %s382 = sand.u32 %s203, 1
        %s383 = scalar_lea.vmem [#allocation15], %s382
        %p384 = scmp.lt.s32.totalorder %s39, 1
        %s385 = scalar_select %p384, %s39, 1
        %p386 = scmp.lt.s32.totalorder %s41, 1
        %s387 = scalar_select %p386, %s41, 1
        %s388 = smul.addr %s385, 2
        %s389 = sadd.s32 %s387, %s388
        %s390 = scalar_lea.vmem %s2, %s389
        %s392 = smul.u32 %s39, 2
        %s393 = sadd.s32 %s392, %s40
        %s394 = smul.u32 %s393, 12
        %s395 = sld [smem:[#allocation7 + %s394]]
        %s396 = sadd.s32 %s394, 1
        %s397 = sld [smem:[#allocation7 + %s396]]
        %s398 = sadd.s32 %s394, 2
        %s399 = sld [smem:[#allocation7 + %s398]]
        %s400 = sadd.s32 %s394, 3
        %s401 = sld [smem:[#allocation7 + %s400]]
        %s402 = sadd.s32 %s394, 4
        %s403 = sld [smem:[#allocation7 + %s402]]
        %s404 = sadd.s32 %s394, 5
        %s405 = sld [smem:[#allocation7 + %s404]]
        %s406 = sadd.s32 %s394, 6
        %s407 = sld [smem:[#allocation7 + %s406]]
        %s408 = sadd.s32 %s394, 7
        %s409 = sld [smem:[#allocation7 + %s408]]
        %s410 = sadd.s32 %s394, 8
        %s411 = sld [smem:[#allocation7 + %s410]]
        %s412 = sadd.s32 %s394, 9
        %s413 = sld [smem:[#allocation7 + %s412]]
        %s414 = sadd.s32 %s394, 10
        %s415 = sld [smem:[#allocation7 + %s414]]
        %s416 = sadd.s32 %s394, 11
        %s417 = sld [smem:[#allocation7 + %s416]]
        %p418 = scmp.eq.s32.totalorder %s41, 0
        // Predicated region
        $region49: #{tpu_custom_call.1} parent=35 // pred_check
          %p419 = pneg %p418
        $region50: #{tpu_custom_call.1} parent=35 // pred_check_branch
          %421 = sbr.rel (%p419) target = $region52
        $region51: #{tpu_custom_call.1} parent=35 // pred_region
          %422 = vst [vmem:[#allocation2] sm:$0x1] 0.0
          %423 = vst [vmem:[#allocation3] sm:$0x1] 0.0
          %v424 = vlaneseq
          %v425 = vshrl.u32 %v424, 7
          %v426 = vadd.s32 %v425, 8
          %427 = vst [vmem:[#allocation4] sm:$0xff] %v425
          %428 = vst [vmem:[#allocation4 + $0x8] sm:$0xff] %v426
          %429 = vst [vmem:[#allocation5] sm:$0xff] %v425
          %430 = vst [vmem:[#allocation5 + $0x8] sm:$0xff] %v426
        $region52: #{tpu_custom_call.1} parent=35 // pred_fallthru
          _
        %v431 = vlaneseq
        %v432 = vand.u32 %v431, 127
        %v433 = vcvt.s32.f32 %v432
        %v434 = vadd.f32 %v433, 0.5
        %v435 = vmul.f32 %v434, 0.0625
        %v436 = vfloor.f32 %v435
        %v437 = vcvt.f32.s32.to.zero.pseudo %v436
        %v438 = vmul.u32 %v437, 16
        %v439 = vsub.s32 %v432, %v438
        %v440 = vcvt.s32.f32 %v439
        %v441 = vadd.f32 %v440, 0.5
        %s442 = smul.u32 %s41, 8
        %v443 = vstv %s442
        %v444 = vadd.s32 %v437, %v443
        %v445 = vcvt.s32.f32 %v444
        %v446 = vadd.f32 %v445, 0.5
        %v447 = vld [vmem:[%s390] sm:$0x1]
        %v448 = vld [vmem:[%s320] sm:$0x1]
        %v449 = vld [vmem:[%s329] sm:$0xf]
        %v450 = vld [vmem:[%s329 + $0x4] sm:$0xf]
        %v451 = vld [vmem:[%s338] sm:$0xf]
        %v452 = vld [vmem:[%s338 + $0x4] sm:$0xf]
        %v453 = vstv %s395
        %v454 = vmul.f32 %v453, %v441
        %v455 = vstv %s397
        %v456 = vmul.f32 %v455, %v446
        %v457 = vadd.f32 %v454, %v456
        %v458 = vstv %s399
        %v459 = vadd.f32 %v457, %v458
        %v460 = vstv %s401
        %v461 = vmul.f32 %v460, %v441
        %v462 = vstv %s403
        %v463 = vmul.f32 %v462, %v446
        %v464 = vadd.f32 %v461, %v463
        %v465 = vstv %s405
        %v466 = vadd.f32 %v464, %v465
        %v467 = vstv %s407
        %v468 = vmul.f32 %v467, %v441
        %v469 = vstv %s409
        %v470 = vmul.f32 %v469, %v446
        %v471 = vadd.f32 %v468, %v470
        %v472 = vstv %s411
        %v473 = vadd.f32 %v471, %v472
        %v474 = vmul.f32 %v447, %v473
        %v475 = vstv %s417
        %v476 = vadd.f32 %v474, %v475
        %v477 = vadd.f32 %v476, 1e-08
        %v478 = vrcp.pop %v477
        %v479 = vmul.f32 1.0, %v478
        %v480 = vmul.f32 %v447, %v459
        %v481 = vstv %s413
        %v482 = vadd.f32 %v480, %v481
        %v483 = vmul.f32 %v482, %v479
        %v484 = vmul.f32 %v447, %v466
        %v485 = vstv %s415
        %v486 = vadd.f32 %v484, %v485
        %v487 = vmul.f32 %v486, %v479
        %v488 = vsub.f32 %v483, 0.5
        %v489 = vmax.f32 %v488, -4.0
        %v490 = vmin.f32 %v489, 20.0
        %v491 = vcvt.f32.s32.ties.to.even %v490
        %v492 = vsub.f32 %v487, 0.5
        %v493 = vmax.f32 %v492, -4.0
        %v494 = vmin.f32 %v493, 20.0
        %v495 = vcvt.f32.s32.ties.to.even %v494
        %v496 = vld [vmem:[#allocation5] sm:$0xff]
        %v497 = vld [vmem:[#allocation5 + $0x8] sm:$0xff]
        %v498 = vlaneseq
        %v499 = vshrl.u32 %v498, 7
        %v500 = vsub.s32 0, %v499
        %v501 = vrot.slane %v491, %v500
        %vm502 = vcmp.eq.s32.totalorder %v496, %v501
        %vm503 = vcmp.eq.s32.totalorder %v497, %v501
        %v504 = vsel %vm502, 1, 0
        %v505 = vsel %vm503, 1, 0
        %v506 = vcvt.s32.f32 %v504
        %v507 = vcvt.s32.f32 %v505
        %v508 = vpack.c.bf16 %v507, %v506
        %v511 = vunpack.c.l.b16 %v451
        %v512 = vunpack.c.l.b16 %v452
        %v513 = vpack.c.b16 %v512, %v511
        %vm514 = vcmask 130048
        %v516 = vsel %vm514, %v513, 0
        %518 = vmatprep.subr.bf16.mxu0 0
        %519 = vmatpush1.bf16.msra.mxu0 %v508
        %520 = vmatprep.subr.bf16.mxu0 0
        %521 = vmatpush1.bf16.msra.mxu0 0
        %522 = vmatprep.subr.bf16.mxu0 0
        %523 = vmatpush1.bf16.msra.mxu0 0
        %524 = vmatprep.subr.bf16.mxu0 0
        %525 = vmatpush1.bf16.msra.mxu0 0
        %526 = vmatprep.subr.bf16.mxu0 0
        %527 = vmatpush1.bf16.msra.mxu0 0
        %528 = vmatprep.subr.bf16.mxu0 0
        %529 = vmatpush1.bf16.msra.mxu0 0
        %530 = vmatprep.subr.bf16.mxu0 0
        %531 = vmatpush1.bf16.msra.mxu0 0
        %532 = vmatprep.subr.bf16.mxu0 0
        %533 = vmatpush1.bf16.msra.mxu0 0
        %534 = vmatprep.subr.bf16.mxu0 0
        %535 = vmatpush1.bf16.msra.mxu0 0
        %536 = vmatprep.subr.bf16.mxu0 0
        %537 = vmatpush1.bf16.msra.mxu0 0
        %538 = vmatprep.subr.bf16.mxu0 0
        %539 = vmatpush1.bf16.msra.mxu0 0
        %540 = vmatprep.subr.bf16.mxu0 0
        %541 = vmatpush1.bf16.msra.mxu0 0
        %542 = vmatprep.subr.bf16.mxu0 0
        %543 = vmatpush1.bf16.msra.mxu0 0
        %544 = vmatprep.subr.bf16.mxu0 0
        %545 = vmatpush1.bf16.msra.mxu0 0
        %546 = vmatprep.subr.bf16.mxu0 0
        %547 = vmatpush1.bf16.msra.mxu0 0
        %548 = vmatprep.subr.bf16.mxu0 0
        %549 = vmatpush1.bf16.msra.mxu0 0
        %550 = vmatprep.mubr.bf16.mxu0 0
        %551 = vmatmul.mubr.bf16.gmra.mrb[0].mxu0 %v516
        %v552 = vpop.f32.mrb[0].mxu0
        %v553 = vadd.f32 0.0, %v552
        %v554 = vpop.f32.mrb[0].mxu0
        %v555 = vpop.f32.mrb[0].mxu0
        %v556 = vadd.f32 0.0, %v555
        %v557 = vpop.f32.mrb[0].mxu0
        %558 = vdwg.mxu0
        %v561 = vunpack.c.l.b16 %v449
        %v562 = vunpack.c.l.b16 %v450
        %v563 = vpack.c.b16 %v562, %v561
        %v565 = vsel %vm514, %v563, 0
        %567 = vmatprep.subr.bf16.mxu0 0
        %568 = vmatpush1.bf16.msra.mxu0 %v508
        %569 = vmatprep.subr.bf16.mxu0 0
        %570 = vmatpush1.bf16.msra.mxu0 0
        %571 = vmatprep.subr.bf16.mxu0 0
        %572 = vmatpush1.bf16.msra.mxu0 0
        %573 = vmatprep.subr.bf16.mxu0 0
        %574 = vmatpush1.bf16.msra.mxu0 0
        %575 = vmatprep.subr.bf16.mxu0 0
        %576 = vmatpush1.bf16.msra.mxu0 0
        %577 = vmatprep.subr.bf16.mxu0 0
        %578 = vmatpush1.bf16.msra.mxu0 0
        %579 = vmatprep.subr.bf16.mxu0 0
        %580 = vmatpush1.bf16.msra.mxu0 0
        %581 = vmatprep.subr.bf16.mxu0 0
        %582 = vmatpush1.bf16.msra.mxu0 0
        %583 = vmatprep.subr.bf16.mxu0 0
        %584 = vmatpush1.bf16.msra.mxu0 0
        %585 = vmatprep.subr.bf16.mxu0 0
        %586 = vmatpush1.bf16.msra.mxu0 0
        %587 = vmatprep.subr.bf16.mxu0 0
        %588 = vmatpush1.bf16.msra.mxu0 0
        %589 = vmatprep.subr.bf16.mxu0 0
        %590 = vmatpush1.bf16.msra.mxu0 0
        %591 = vmatprep.subr.bf16.mxu0 0
        %592 = vmatpush1.bf16.msra.mxu0 0
        %593 = vmatprep.subr.bf16.mxu0 0
        %594 = vmatpush1.bf16.msra.mxu0 0
        %595 = vmatprep.subr.bf16.mxu0 0
        %596 = vmatpush1.bf16.msra.mxu0 0
        %597 = vmatprep.subr.bf16.mxu0 0
        %598 = vmatpush1.bf16.msra.mxu0 0
        %599 = vmatprep.mubr.bf16.mxu0 0
        %600 = vmatmul.mubr.bf16.gmra.mrb[0].mxu0 %v565
        %v601 = vpop.f32.mrb[0].mxu0
        %v602 = vadd.f32 %v553, %v601
        %v603 = vpop.f32.mrb[0].mxu0
        %v604 = vpop.f32.mrb[0].mxu0
        %v605 = vadd.f32 %v556, %v604
        %v606 = vpop.f32.mrb[0].mxu0
        %607 = vdwg.mxu0
        %v608 = vld [vmem:[#allocation4] sm:$0xff]
        %v609 = vld [vmem:[#allocation4 + $0x8] sm:$0xff]
        %v610 = vlaneseq
        %v611 = vshrl.u32 %v610, 7
        %v612 = vsub.s32 0, %v611
        %v613 = vrot.slane %v495, %v612
        %vm614 = vcmp.eq.s32.totalorder %v608, %v613
        %vm615 = vcmp.eq.s32.totalorder %v609, %v613
        %v616 = vsel %vm614, %v602, 0.0
        %v617 = vsel %vm615, %v605, 0.0
        %v618 = vadd.f32 %v616, %v617
        %v619 = vrot.slane %v618, 4
        %v620 = vadd.f32 %v618, %v619
        %v621 = vrot.slane %v620, 2
        %v622 = vadd.f32 %v620, %v621
        %v623 = vrot.slane %v622, 1
        %v624 = vadd.f32 %v622, %v623
        %v625 = vmul.f32 %v624, 1.05
        %vm626 = vcmp.lt.f32.partialorder %v476, %v625
        %vm627 = vcmp.gt.f32.partialorder %v476, 0.0
        %vm628 = vmand %vm626, %vm627
        %vm629 = vcmp.gt.f32.partialorder %v624, 0.0
        %vm630 = vmand %vm628, %vm629
        %v631 = vmul.f32 %v448, %v473
        %v632 = vadd.f32 %v631, %v475
        %v633 = vlog2.pop %v624
        %v634 = vmul.f32 %v633, 0.6931472
        %v635 = vlog2.pop %v632
        %v636 = vmul.f32 %v635, 0.6931472
        %v637 = vsub.f32 %v634, %v636
        %v638 = vand.u32 2147483647, %v637
        %vm639 = vcmp.ne.f32.partialorder %v638, %v638
        %vm640 = vmxor %vm639, 1
        %vm641 = vmand %vm630, %vm640
        %v642 = vld [vmem:[#allocation2] sm:$0x1]
        %v643 = vsel %vm641, %v638, 0.0
        %v644 = vadd.f32 %v642, %v643
        %645 = vst [vmem:[#allocation2] sm:$0x1] %v644
        %v646 = vld [vmem:[#allocation3] sm:$0x1]
        %v647 = vsel %vm641, 1, 0
        %v648 = vcvt.s32.f32 %v647
        %v649 = vadd.f32 %v646, %v648
        %650 = vst [vmem:[#allocation3] sm:$0x1] %v649
        %p651 = scmp.eq.s32.totalorder %s41, 1
        // Predicated region
        $region53: #{tpu_custom_call.1} parent=35 // pred_check
          %p652 = pneg %p651
        $region54: #{tpu_custom_call.1} parent=35 // pred_check_branch
          %654 = sbr.rel (%p652) target = $region56
        $region55: #{tpu_custom_call.1} parent=35 // pred_region
          %v655 = vld [vmem:[#allocation2] sm:$0x1]
          %vm656 = vcmask 1040384
          %v657 = vsel %vm656, %v655, 0.0
          %658 = vadd.xlane.f32.xlu0 %v657
          %v659 = vpop.xlane.xlu0 %658
          %v660 = vrot.slane %v659, 4
          %v661 = vadd.f32 %v659, %v660
          %v662 = vrot.slane %v661, 2
          %v663 = vadd.f32 %v661, %v662
          %v664 = vrot.slane %v663, 1
          %v665 = vadd.f32 %v663, %v664
          %s666 = vtos %v665
          %v667 = vstv %s666
          %668 = vst [vmem:[%s377] sm:$0x1] %v667
          %v669 = vld [vmem:[#allocation3] sm:$0x1]
          %v670 = vsel %vm656, %v669, 0.0
          %671 = vadd.xlane.f32.xlu0 %v670
          %v672 = vpop.xlane.xlu0 %671
          %v673 = vrot.slane %v672, 4
          %v674 = vadd.f32 %v672, %v673
          %v675 = vrot.slane %v674, 2
          %v676 = vadd.f32 %v674, %v675
          %v677 = vrot.slane %v676, 1
          %v678 = vadd.f32 %v676, %v677
          %s679 = vtos %v678
          %v680 = vstv %s679
          %681 = vst [vmem:[%s383] sm:$0x1] %v680
        $region56: #{tpu_custom_call.1} parent=35 // pred_fallthru
          _
        %s682 = sand.u32 %s175, 1
        %s683 = scalar_lea.sflag [#allocation10], %s682
        %s684 = sand.u32 %s175, 1
        %s685 = scalar_lea.vmem [#allocation14], %s684
        %s686 = sand.u32 %s203, 1
        %s687 = scalar_lea.sflag [#allocation16], %s686
        %s688 = sand.u32 %s203, 1
        %s689 = scalar_lea.vmem [#allocation15], %s688
        // Predicated region
        $region57: #{tpu_custom_call.1} parent=35 // pred_check
          %p690 = pneg %p185
        $region58: #{tpu_custom_call.1} parent=35 // pred_check_branch
          %692 = sbr.rel (%p690) target = $region60
        $region59: #{tpu_custom_call.1} parent=35 // pred_region
          %s694 = ssub.s32 16, 16
          %695 = vsyncadd %s683, %s694
          %s696 = smul.addr %s39, 2
          %s697 = sadd.s32 %s40, %s696
          %s698 = smul.addr %s697, 16
          %s699 = scalar_lea.hbm %s5, %s698
          %s701 = sshll.u32 %s685, 4
          %s702 = int_to_ptr.vmem [resolvable:$true] %s701
          %704 = dma.vmem_to_hbm [thread:$0]  %s702, 16, %s699, %s683
        $region60: #{tpu_custom_call.1} parent=35 // pred_fallthru
          _
        // Predicated region
        $region61: #{tpu_custom_call.1} parent=35 // pred_check
          %p705 = pneg %p213
        $region62: #{tpu_custom_call.1} parent=35 // pred_check_branch
          %707 = sbr.rel (%p705) target = $region64
        $region63: #{tpu_custom_call.1} parent=35 // pred_region
          %s709 = ssub.s32 16, 16
          %710 = vsyncadd %s687, %s709
          %s711 = smul.addr %s39, 2
          %s712 = sadd.s32 %s40, %s711
          %s713 = smul.addr %s712, 16
          %s714 = scalar_lea.hbm %s6, %s713
          %s716 = sshll.u32 %s689, 4
          %s717 = int_to_ptr.vmem [resolvable:$true] %s716
          %719 = dma.vmem_to_hbm [thread:$0]  %s717, 16, %s714, %s687
        $region64: #{tpu_custom_call.1} parent=35 // pred_fallthru
          _
      $region36: #{tpu_custom_call.1} parent=5 // pred_fallthru
        _
      %p720 = scmp.le.s32.totalorder 2, %s29
      // Predicated region
      $region65: #{tpu_custom_call.1} parent=5 // pred_check
        %p721 = pneg %p720
      $region66: #{tpu_custom_call.1} parent=5 // pred_check_branch
        %723 = sbr.rel (%p721) target = $region68
      $region67: #{tpu_custom_call.1} parent=5 // pred_region
        %s724 = ssub.s32 %s29, 2
        // Predicated region
        $region69: #{tpu_custom_call.1} parent=67 // pred_check
          %p725 = pneg %p191
        $region70: #{tpu_custom_call.1} parent=67 // pred_check_branch
          %727 = sbr.rel (%p725) target = $region72
        $region71: #{tpu_custom_call.1} parent=67 // pred_region
          %s728 = sand.u32 %s176, 1
          %s729 = scalar_lea.sflag [#allocation10], %s728
          %s730 = sand.u32 %s176, 1
          %s731 = scalar_lea.vmem [#allocation14], %s730
          %732 = dma.done %s729, 16
        $region72: #{tpu_custom_call.1} parent=67 // pred_fallthru
          _
        // Predicated region
        $region73: #{tpu_custom_call.1} parent=67 // pred_check
          %p733 = pneg %p219
        $region74: #{tpu_custom_call.1} parent=67 // pred_check_branch
          %735 = sbr.rel (%p733) target = $region76
        $region75: #{tpu_custom_call.1} parent=67 // pred_region
          %s736 = sand.u32 %s204, 1
          %s737 = scalar_lea.sflag [#allocation16], %s736
          %s738 = sand.u32 %s204, 1
          %s739 = scalar_lea.vmem [#allocation15], %s738
          %740 = dma.done %s737, 16
        $region76: #{tpu_custom_call.1} parent=67 // pred_fallthru
          _
      $region68: #{tpu_custom_call.1} parent=5 // pred_fallthru
        _
    $region6: #{tpu_custom_call.1} parent=1 // loop_footer
      %s33 = sadd.s32 1, %s29
    $region7: #{tpu_custom_call.1} parent=1 // loop_footer_branch
      %28 = sbr.rel target = $region3
    $region8: #{tpu_custom_call.1} parent=1 // loop_exit
      _
    %741 = vsyncpa [#allocation9], 1
    %s742 = scalar_lea.sflag [#allocation9], 1
    %743 = vsyncpa %s742, 1
    %744 = vsyncpa [#allocation12], 1
    %s745 = scalar_lea.sflag [#allocation12], 1
    %746 = vsyncpa %s745, 1
    %747 = vsyncpa [#allocation10], 1
    %s748 = scalar_lea.sflag [#allocation10], 1
    %749 = vsyncpa %s748, 1
    %750 = vsyncpa [#allocation16], 1
    %s751 = scalar_lea.sflag [#allocation16], 1
    %752 = vsyncpa %s751, 1

</llo_original>
